<compile_context>
chip_gen: v7x
topology: tpu7x:2x2x1
jax: 0.10.0
libtpu: 0.0.40
codegen_flags: <defaults>
</compile_context>

<pallas_src>
import functools

import jax
import jax.numpy as jnp
from jax.experimental import pallas as pl
from jax.experimental.pallas import tpu as pltpu


def _center_loss_kernel(feat_ref, label_ref, center_ref,
                        partial_ref, new_center_ref, *, decay_rate):
    t = pl.program_id(0)

    feat = feat_ref[...]                                   # [B, F_pad]
    labels = label_ref[...]                                # [B, 1] int32
    center = center_ref[...]                               # [TC, F_pad] f32
    B = feat.shape[0]
    TC = center.shape[0]

    # Lane-dense one-hot [B, TC] (classes on lanes, batch on sublanes),
    # materialized once in the matmul dtype and reused for both contractions.
    class_ids = t * TC + jax.lax.broadcasted_iota(jnp.int32, (B, TC), 1)
    onehot = (class_ids == labels).astype(feat.dtype)      # [B, TC]

    # Per-class feature sums and counts: two MXU matmuls contracting the batch
    # axis (K=B).  No sublane reduce / lane->sublane transpose on the XLU.
    sums = jax.lax.dot_general(
        onehot, feat,
        dimension_numbers=(((0,), (0,)), ((), ())),
        preferred_element_type=jnp.float32)                # [TC, F_pad]
    ones = jnp.ones((B, 1), feat.dtype)
    counts = jax.lax.dot_general(
        onehot, ones,
        dimension_numbers=(((0,), (0,)), ((), ())),
        preferred_element_type=jnp.float32)                # [TC, 1]

    # Safe mean: TC scalar reciprocals (not TC*F divides), then scale.
    inv_counts = 1.0 / jnp.maximum(counts, 1.0)            # [TC, 1]
    means = sums * inv_counts                              # [TC, F_pad]

    # EMA update; classes not present in the batch keep their old center.
    updated = decay_rate * center + (1.0 - decay_rate) * means
    new_center = jnp.where(counts > 0.0, updated, center)  # [TC, F_pad]
    new_center_ref[...] = new_center

    # Per-class partial of the algebraic MSE:
    #   counts_c*||c_c||^2 - 2*<sums_c, c_c>
    # The sum||f||^2 term, the global reduce and /(B*F) happen in the wrapper,
    # so there is no cross-iteration dependency (class axis is parallel).
    contrib = new_center * (counts * new_center - 2.0 * sums)   # [TC, F_pad]
    partial_ref[...] = jnp.sum(contrib, axis=1, keepdims=True)  # [TC, 1]


def _pick_class_tile(f_pad, batch):
    """Class-tile size and vmem limit derived from this chip's VMEM capacity."""
    try:
        vmem_cap = int(pltpu.get_tpu_info().vmem_capacity_bytes)
    except Exception:
        vmem_cap = 64 << 20                      # v7x worst case (per TC)
    vmem_limit = int(min(vmem_cap * 3 // 4, 100 << 20))   # leave headroom
    budget = vmem_limit // 2                     # fill ~half the scoped budget
    # Per-class-row bytes: double-buffered f32 center in (2x) + out (2x)
    # + ~3 f32 temporaries (sums / updated / contrib) + one-hot column.
    row_bytes = 7 * f_pad * 4 + batch * 4 + 16
    fixed = 2 * (batch * f_pad * 4 + batch * 4)  # resident feature/label bufs
    tc = (max(budget - fixed, 8 * row_bytes) // row_bytes) // 8 * 8
    tc = int(max(8, min(tc, 4096)))
    return tc, vmem_limit


def center_loss(batch_feature, batch_label, center_feature,
                decay_rate=0.99, class_tile=None):
    """Returns (loss, updated_center_feature)."""
    B, F = batch_feature.shape
    C, F2 = center_feature.shape
    assert F == F2
    labels = batch_label.astype(jnp.int32).reshape(B, 1)

    # Lane-dense feature axis (multiple of 128): unmasked center writeback and
    # no wasted lane padding in the [tc, F] VMEM buffers.  Padded columns are
    # zero in both features and centers, so they stay zero and contribute 0.
    F_pad = max(128, pl.cdiv(F, 128) * 128)
    feat = batch_feature
    centers = center_feature.astype(jnp.float32)
    if F_pad != F:
        feat = jnp.pad(feat, ((0, 0), (0, F_pad - F)))
        centers = jnp.pad(centers, ((0, 0), (0, F_pad - F)))

    auto_tc, vmem_limit = _pick_class_tile(F_pad, B)
    tc = auto_tc if class_tile is None else int(class_tile)
    if C <= tc:
        tc, c_pad = C, C                         # single full-extent tile
    else:
        assert tc % 8 == 0, "class_tile must be a multiple of 8"
        c_pad = pl.cdiv(C, tc) * tc
        if c_pad != C:
            # padded classes never match a label -> counts=0 -> unchanged rows
            centers = jnp.pad(centers, ((0, c_pad - C), (0, 0)))
    n_tiles = c_pad // tc

    kernel = functools.partial(_center_loss_kernel,
                               decay_rate=float(decay_rate))
    partial, new_center = pl.pallas_call(
        kernel,
        grid=(n_tiles,),
        out_shape=(jax.ShapeDtypeStruct((c_pad, 1), jnp.float32),
                   jax.ShapeDtypeStruct((c_pad, F_pad), jnp.float32)),
        in_specs=[pl.BlockSpec((B, F_pad), lambda t: (0, 0)),    # features (resident)
                  pl.BlockSpec((B, 1), lambda t: (0, 0)),        # labels (resident)
                  pl.BlockSpec((tc, F_pad), lambda t: (t, 0))],  # center tile
        out_specs=(pl.BlockSpec((tc, 1), lambda t: (t, 0)),      # per-class loss partial
                   pl.BlockSpec((tc, F_pad), lambda t: (t, 0))), # new centers
        input_output_aliases={2: 1},     # centers buffer reused for updated centers
        compiler_params=pltpu.CompilerParams(
            dimension_semantics=("parallel",),
            vmem_limit_bytes=vmem_limit),
    )(feat, labels, centers)

    # Hoisted terms: sum||f||^2, global reduce of per-class partials, /(B*F).
    feat_f32 = batch_feature.astype(jnp.float32)
    loss = (jnp.sum(feat_f32 * feat_f32) + jnp.sum(partial)) / float(B * F)
    return loss, new_center[:C, :F]


def _reference(batch_feature, batch_label, center_feature, decay_rate=0.99):
    """Pure-JAX reference for validation."""
    C, F = center_feature.shape
    onehot = jax.nn.one_hot(batch_label, C, dtype=jnp.float32)      # [B, C]
    counts = onehot.sum(0)[:, None]                                 # [C, 1]
    sums = onehot.T @ batch_feature                                 # [C, F]
    means = sums / jnp.maximum(counts, 1.0)
    updated = decay_rate * center_feature + (1.0 - decay_rate) * means
    new_center = jnp.where(counts > 0.0, updated, center_feature)
    gathered = new_center[batch_label]
    loss = jnp.mean((batch_feature - gathered) ** 2)
    return loss, new_center


if __name__ == "__main__":
    batch, feature_len, num_classes = 8, 32, 10
    decay_rate = 0.99

    key = jax.random.PRNGKey(0)
    kf, kl = jax.random.split(key)
    batch_feature = jax.random.normal(kf, (batch, feature_len), jnp.float32)
    batch_label = jax.random.randint(kl, (batch,), 0, num_classes, jnp.int32)
    # module's __init__: register_buffer('center_feature', zeros(C, F))
    center_feature = jnp.zeros((num_classes, feature_len), jnp.float32)

    ref_loss, ref_center = _reference(batch_feature, batch_label,
                                      center_feature, decay_rate)

    # Auto-sized (single-tile) path.
    loss, new_center = center_loss(batch_feature, batch_label,
                                   center_feature, decay_rate)
    jax.block_until_ready((loss, new_center))
    assert jnp.allclose(loss, ref_loss, atol=1e-4, rtol=1e-4), (loss, ref_loss)
    assert jnp.allclose(new_center, ref_center, atol=1e-5, rtol=1e-5)

    # Multi-tile + class-padding path (exercises the grid / padded classes).
    loss2, new_center2 = center_loss(batch_feature, batch_label,
                                     center_feature, decay_rate, class_tile=8)
    jax.block_until_ready((loss2, new_center2))
    assert jnp.allclose(loss2, ref_loss, atol=1e-4, rtol=1e-4), (loss2, ref_loss)
    assert jnp.allclose(new_center2, ref_center, atol=1e-5, rtol=1e-5)

    print("KERNEL_OK")
</pallas_src>

<mosaic_0001>
module attributes {stable_mosaic.version = 11 : i64} {
  func.func @_center_loss_kernel(%arg0: i32, %arg1: memref<8x128xf32, #tpu.memory_space<vmem>>, %arg2: memref<8x1xi32, #tpu.memory_space<vmem>>, %arg3: memref<10x128xf32, #tpu.memory_space<vmem>>, %arg4: memref<10x1xf32, #tpu.memory_space<vmem>>, %arg5: memref<10x128xf32, #tpu.memory_space<vmem>>) attributes {dimension_semantics = [#tpu.dimension_semantics<parallel>], iteration_bounds = array<i64: 1>, scalar_prefetch = 0 : i64, scratch_operands = 0 : i64, tpu.core_type = #tpu.core_type<tc>, window_params = [{pipeline_mode = #tpu.pipeline_mode<synchronous>, transform_indices = @transform_0, window_bounds = array<i64: 8, 128>}, {pipeline_mode = #tpu.pipeline_mode<synchronous>, transform_indices = @transform_1, window_bounds = array<i64: 8, 1>}, {transform_indices = @transform_2, window_bounds = array<i64: 10, 128>}, {transform_indices = @transform_3, window_bounds = array<i64: 10, 1>}, {transform_indices = @transform_4, window_bounds = array<i64: 10, 128>}]} {
    %c0 = arith.constant 0 : index
    %c0_0 = arith.constant 0 : index
    %0 = vector.load %arg1[%c0, %c0_0] : memref<8x128xf32, #tpu.memory_space<vmem>>, vector<8x128xf32>
    %c0_1 = arith.constant 0 : index
    %c0_2 = arith.constant 0 : index
    %1 = vector.load %arg2[%c0_1, %c0_2] : memref<8x1xi32, #tpu.memory_space<vmem>>, vector<8x1xi32>
    %c0_3 = arith.constant 0 : index
    %c0_4 = arith.constant 0 : index
    %2 = vector.load %arg3[%c0_3, %c0_4] : memref<10x128xf32, #tpu.memory_space<vmem>>, vector<10x128xf32>
    %c10_i32 = arith.constant 10 : i32
    %3 = arith.muli %arg0, %c10_i32 : i32
    %4 = tpu.iota {dimensions = array<i32: 1>} : vector<8x10xi32>
    %5 = vector.broadcast %3 : i32 to vector<8x10xi32>
    %6 = arith.addi %5, %4 : vector<8x10xi32>
    %7 = vector.broadcast %1 : vector<8x1xi32> to vector<8x10xi32>
    %8 = arith.cmpi eq, %6, %7 : vector<8x10xi32>
    %9 = arith.extui %8 : vector<8x10xi1> to vector<8x10xi32>
    %10 = arith.sitofp %9 : vector<8x10xi32> to vector<8x10xf32>
    %cst = arith.constant dense<0.000000e+00> : vector<10x128xf32>
    %11 = tpu.matmul %10, %0, %cst {dimension_numbers = #tpu.dot_dimension_numbers<[0], [0], [1], [1], [0, 1, 1, 1], [], []>} : vector<8x10xf32>, vector<8x128xf32>, vector<10x128xf32> -> vector<10x128xf32>
    %cst_5 = arith.constant 1.000000e+00 : f32
    %12 = vector.broadcast %cst_5 : f32 to vector<8x1xf32>
    %cst_6 = arith.constant dense<0.000000e+00> : vector<10x1xf32>
    %13 = tpu.matmul %10, %12, %cst_6 {dimension_numbers = #tpu.dot_dimension_numbers<[0], [0], [1], [1], [0, 1, 1, 1], [], []>} : vector<8x10xf32>, vector<8x1xf32>, vector<10x1xf32> -> vector<10x1xf32>
    %cst_7 = arith.constant 1.000000e+00 : f32
    %14 = vector.broadcast %cst_7 : f32 to vector<10x1xf32>
    %15 = arith.maximumf %13, %14 : vector<10x1xf32>
    %cst_8 = arith.constant 1.000000e+00 : f32
    %16 = vector.broadcast %cst_8 : f32 to vector<10x1xf32>
    %17 = arith.divf %16, %15 : vector<10x1xf32>
    %18 = vector.broadcast %17 : vector<10x1xf32> to vector<10x128xf32>
    %19 = arith.mulf %11, %18 : vector<10x128xf32>
    %cst_9 = arith.constant 9.900000e-01 : f32
    %20 = vector.broadcast %cst_9 : f32 to vector<10x128xf32>
    %21 = arith.mulf %20, %2 : vector<10x128xf32>
    %cst_10 = arith.constant 0.00999999977 : f32
    %22 = vector.broadcast %cst_10 : f32 to vector<10x128xf32>
    %23 = arith.mulf %22, %19 : vector<10x128xf32>
    %24 = arith.addf %21, %23 : vector<10x128xf32>
    %cst_11 = arith.constant 0.000000e+00 : f32
    %25 = vector.broadcast %cst_11 : f32 to vector<10x1xf32>
    %26 = arith.cmpf ogt, %13, %25 : vector<10x1xf32>
    %27 = vector.shape_cast %26 : vector<10x1xi1> to vector<10x1xi1>
    %28 = vector.broadcast %27 : vector<10x1xi1> to vector<10x128xi1>
    %29 = arith.select %28, %24, %2 : vector<10x128xi1>, vector<10x128xf32>
    %c0_12 = arith.constant 0 : index
    %c0_13 = arith.constant 0 : index
    %30 = vector.load %arg5[%c0_12, %c0_13] : memref<10x128xf32, #tpu.memory_space<vmem>>, vector<10x128xf32>
    tpu.vector_store %arg5[%c0_12, %c0_13], %29 {strides = array<i32>} : memref<10x128xf32, #tpu.memory_space<vmem>>, vector<10x128xf32>,
    %31 = vector.broadcast %13 : vector<10x1xf32> to vector<10x128xf32>
    %32 = arith.mulf %31, %29 : vector<10x128xf32>
    %cst_14 = arith.constant 2.000000e+00 : f32
    %33 = vector.broadcast %cst_14 : f32 to vector<10x128xf32>
    %34 = arith.mulf %33, %11 : vector<10x128xf32>
    %35 = arith.subf %32, %34 : vector<10x128xf32>
    %36 = arith.mulf %29, %35 : vector<10x128xf32>
    %cst_15 = arith.constant dense<0.000000e+00> : vector<10xf32>
    %37 = vector.multi_reduction <add>, %36, %cst_15 [1] : vector<10x128xf32> to vector<10xf32>
    %38 = vector.shape_cast %37 : vector<10xf32> to vector<10x1xf32>
    %c0_16 = arith.constant 0 : index
    %c0_17 = arith.constant 0 : index
    %39 = vector.load %arg4[%c0_16, %c0_17] : memref<10x1xf32, #tpu.memory_space<vmem>>, vector<10x1xf32>
    tpu.vector_store %arg4[%c0_16, %c0_17], %38 {strides = array<i32>} : memref<10x1xf32, #tpu.memory_space<vmem>>, vector<10x1xf32>,
    return
  }
  func.func @transform_0(%arg0: i32) -> (i32, i32) {
    %c0_i32 = arith.constant 0 : i32
    %c0_i32_0 = arith.constant 0 : i32
    %c0_i32_1 = arith.constant 0 : i32
    return %c0_i32, %c0_i32_0 : i32, i32
  }
  func.func @transform_1(%arg0: i32) -> (i32, i32) {
    %c0_i32 = arith.constant 0 : i32
    %c0_i32_0 = arith.constant 0 : i32
    %c0_i32_1 = arith.constant 0 : i32
    return %c0_i32, %c0_i32_0 : i32, i32
  }
  func.func @transform_2(%arg0: i32) -> (i32, i32) {
    %c0_i32 = arith.constant 0 : i32
    %c0_i32_0 = arith.constant 0 : i32
    return %arg0, %c0_i32 : i32, i32
  }
  func.func @transform_3(%arg0: i32) -> (i32, i32) {
    %c0_i32 = arith.constant 0 : i32
    %c0_i32_0 = arith.constant 0 : i32
    return %arg0, %c0_i32 : i32, i32
  }
  func.func @transform_4(%arg0: i32) -> (i32, i32) {
    %c0_i32 = arith.constant 0 : i32
    %c0_i32_0 = arith.constant 0 : i32
    return %arg0, %c0_i32 : i32, i32
  }
}

</mosaic_0001>

<llo_original>
// kernel: tpu_custom_call.1
$region0: #{tpu_custom_call.1}
  #allocation0 [shape = 'u32[]', space=smem, size = 0x4, offset = 0x4, fixed_abs, tag = 'smem constant byte address 0x4 - core index']
  #allocation1 [shape = 'u32[144,128]{1,0:T(1,128)}', space=vmem, size = 0x12000, scoped, tag = 'internal scratch']
  %s0 = inlined_call_operand.vmem [shape: f32[8,128], index: 0, kind: input, shape index: {}]
  %s1 = inlined_call_operand.vmem [shape: s32[8,1], index: 1, kind: input, shape index: {}]
  %s2 = inlined_call_operand.vmem [shape: f32[10,128], index: 2, kind: input, shape index: {}, may-alias: {2,4}]
  %s3 = inlined_call_operand.vmem [shape: f32[10,1], index: 3, kind: output, shape index: {0}]
  %s4 = inlined_call_operand.vmem [shape: f32[10,128], index: 4, kind: output, shape index: {1}, may-alias: {2,4}]
  %5 = xla_tuple %s3, %s4
  %s6 = sld [smem:[#allocation0]]
  $region30: #{tpu_custom_call.1} parent=0
    _
  %s8 = ssub.s32 1, %s6
  %s9 = scalar_select 0, %s8, %s6
  // Predicated region
  $region2: #{tpu_custom_call.1} parent=0 // pred_check
    _
  $region3: #{tpu_custom_call.1} parent=0 // pred_check_branch
    %11 = sbr.rel (0) target = $region5
  $region4: #{tpu_custom_call.1} parent=0 // pred_region
    _
  $region5: #{tpu_custom_call.1} parent=0 // pred_fallthru
    _
  // Predicated region
  $region6: #{tpu_custom_call.1} parent=0 // pred_check
    _
  $region7: #{tpu_custom_call.1} parent=0 // pred_check_branch
    %13 = sbr.rel (0) target = $region9
  $region8: #{tpu_custom_call.1} parent=0 // pred_region
    _
  $region9: #{tpu_custom_call.1} parent=0 // pred_fallthru
    _
  // Predicated region
  $region10: #{tpu_custom_call.1} parent=0 // pred_check
    _
  $region11: #{tpu_custom_call.1} parent=0 // pred_check_branch
    %15 = sbr.rel (0) target = $region13
  $region12: #{tpu_custom_call.1} parent=0 // pred_region
    _
  $region13: #{tpu_custom_call.1} parent=0 // pred_fallthru
    _
  %v16 = vld [vmem:[%s0] sm:$0xff]
  %v17 = vld [vmem:[%s1] sm:$0xff]
  %v18 = vld [vmem:[%s2] sm:$0xff]
  %v19 = vld [vmem:[%s2 + $0x8] sm:$0x3]
  %s20 = smul.u32 0, 10
  %v21 = vlaneseq
  %v22 = vand.u32 %v21, 127
  %v23 = vstv %s20
  %v24 = vadd.s32 %v23, %v22
  %25 = vset.pattern.permute.xlu0 0
  %26 = vperm.xlu0 %25, %v17
  %v27 = vpop.permute.xlu0 %26
  %vm28 = vcmp.eq.s32.totalorder %v24, %v27
  %v29 = vsel %vm28, 1, 0
  %v30 = vcvt.s32.f32 %v29
  %31 = vxpose.xlu0.b32.start [1/16] %v30, 128
  %32 = vxpose.xlu0.b32.cont [2/16] 0.0, 128
  %33 = vxpose.xlu0.b32.cont [3/16] 0.0, 128
  %34 = vxpose.xlu0.b32.cont [4/16] 0.0, 128
  %35 = vxpose.xlu0.b32.cont [5/16] 0.0, 128
  %36 = vxpose.xlu0.b32.cont [6/16] 0.0, 128
  %37 = vxpose.xlu0.b32.cont [7/16] 0.0, 128
  %38 = vxpose.xlu0.b32.cont [8/16] 0.0, 128
  %39 = vxpose.xlu0.b32.cont [9/16] 0.0, 128
  %40 = vxpose.xlu0.b32.cont [10/16] 0.0, 128
  %41 = vxpose.xlu0.b32.cont [11/16] 0.0, 128
  %42 = vxpose.xlu0.b32.cont [12/16] 0.0, 128
  %43 = vxpose.xlu0.b32.cont [13/16] 0.0, 128
  %44 = vxpose.xlu0.b32.cont [14/16] 0.0, 128
  %45 = vxpose.xlu0.b32.cont [15/16] 0.0, 128
  %46 = vxpose.xlu0.b32.end [16/16] 0.0, 128
  %v47 = vpop.trf.xlu0
  %v48 = vpop.trf.xlu0
  %v49 = vpop.trf.xlu0
  %v50 = vpop.trf.xlu0
  %v51 = vpop.trf.xlu0
  %v52 = vpop.trf.xlu0
  %v53 = vpop.trf.xlu0
  %v54 = vpop.trf.xlu0
  %v55 = vpop.trf.xlu0
  %v56 = vpop.trf.xlu0
  %v57 = vpop.trf.xlu0
  %v58 = vpop.trf.xlu0
  %v59 = vpop.trf.xlu0
  %v60 = vpop.trf.xlu0
  %v61 = vpop.trf.xlu0
  %v62 = vpop.trf.xlu0
  %vm63 = vcmask 64512
  %v65 = vsel %vm63, %v47, 0
  %v68 = vsel %vm63, %v48, 0
  %70 = vmatprep.subr.mxu0 0.0
  %71 = vmatpush1.msra.mxu0 %v16
  %72 = vmatprep.subr.mxu0 0.0
  %73 = vmatpush1.msra.mxu0 0.0
  %74 = vmatprep.subr.mxu0 0.0
  %75 = vmatpush1.msra.mxu0 0.0
  %76 = vmatprep.subr.mxu0 0.0
  %77 = vmatpush1.msra.mxu0 0.0
  %78 = vmatprep.subr.mxu0 0.0
  %79 = vmatpush1.msra.mxu0 0.0
  %80 = vmatprep.subr.mxu0 0.0
  %81 = vmatpush1.msra.mxu0 0.0
  %82 = vmatprep.subr.mxu0 0.0
  %83 = vmatpush1.msra.mxu0 0.0
  %84 = vmatprep.subr.mxu0 0.0
  %85 = vmatpush1.msra.mxu0 0.0
  %86 = vmatprep.subr.mxu0 0.0
  %87 = vmatpush1.msra.mxu0 0.0
  %88 = vmatprep.subr.mxu0 0.0
  %89 = vmatpush1.msra.mxu0 0.0
  %90 = vmatprep.subr.mxu0 0.0
  %91 = vmatpush1.msra.mxu0 0.0
  %92 = vmatprep.subr.mxu0 0.0
  %93 = vmatpush1.msra.mxu0 0.0
  %94 = vmatprep.subr.mxu0 0.0
  %95 = vmatpush1.msra.mxu0 0.0
  %96 = vmatprep.subr.mxu0 0.0
  %97 = vmatpush1.msra.mxu0 0.0
  %98 = vmatprep.subr.mxu0 0.0
  %99 = vmatpush1.msra.mxu0 0.0
  %100 = vmatprep.subr.mxu0 0.0
  %101 = vmatpush1.msra.mxu0 0.0
  %102 = vmatprep.subr.mxu0 0.0
  %103 = vmatpush1.msra.mxu0 0.0
  %104 = vmatprep.subr.mxu0 0.0
  %105 = vmatpush1.msra.mxu0 0.0
  %106 = vmatprep.subr.mxu0 0.0
  %107 = vmatpush1.msra.mxu0 0.0
  %108 = vmatprep.subr.mxu0 0.0
  %109 = vmatpush1.msra.mxu0 0.0
  %110 = vmatprep.subr.mxu0 0.0
  %111 = vmatpush1.msra.mxu0 0.0
  %112 = vmatprep.subr.mxu0 0.0
  %113 = vmatpush1.msra.mxu0 0.0
  %114 = vmatprep.subr.mxu0 0.0
  %115 = vmatpush1.msra.mxu0 0.0
  %116 = vmatprep.subr.mxu0 0.0
  %117 = vmatpush1.msra.mxu0 0.0
  %118 = vmatprep.subr.mxu0 0.0
  %119 = vmatpush1.msra.mxu0 0.0
  %120 = vmatprep.subr.mxu0 0.0
  %121 = vmatpush1.msra.mxu0 0.0
  %122 = vmatprep.subr.mxu0 0.0
  %123 = vmatpush1.msra.mxu0 0.0
  %124 = vmatprep.subr.mxu0 0.0
  %125 = vmatpush1.msra.mxu0 0.0
  %126 = vmatprep.subr.mxu0 0.0
  %127 = vmatpush1.msra.mxu0 0.0
  %128 = vmatprep.subr.mxu0 0.0
  %129 = vmatpush1.msra.mxu0 0.0
  %130 = vmatprep.subr.mxu0 0.0
  %131 = vmatpush1.msra.mxu0 0.0
  %132 = vmatprep.subr.mxu0 0.0
  %133 = vmatpush1.msra.mxu0 0.0
  %134 = vmatprep.mubr.f32.mxu0 0.0
  %135 = vmatmul.mubr.f32.gmra.mrb[0].mxu0 %v65
  %v136 = vpop.f32.mrb[0].mxu0
  %v137 = vadd.f32 0.0, %v136
  %v138 = vpop.f32.mrb[0].mxu0
  %139 = vmatprep.mubr.f32.mxu0 0.0
  %140 = vmatmul.mubr.f32.gmra.mrb[0].mxu0 %v68
  %v141 = vpop.f32.mrb[0].mxu0
  %v142 = vadd.f32 0.0, %v141
  %v143 = vpop.f32.mrb[0].mxu0
  %144 = vdwg.mxu0
  %145 = vmatprep.subr.mxu0 0.0
  %146 = vmatpush1.msra.mxu0 1.0
  %147 = vmatprep.subr.mxu0 0.0
  %148 = vmatpush1.msra.mxu0 0.0
  %149 = vmatprep.subr.mxu0 0.0
  %150 = vmatpush1.msra.mxu0 0.0
  %151 = vmatprep.subr.mxu0 0.0
  %152 = vmatpush1.msra.mxu0 0.0
  %153 = vmatprep.subr.mxu0 0.0
  %154 = vmatpush1.msra.mxu0 0.0
  %155 = vmatprep.subr.mxu0 0.0
  %156 = vmatpush1.msra.mxu0 0.0
  %157 = vmatprep.subr.mxu0 0.0
  %158 = vmatpush1.msra.mxu0 0.0
  %159 = vmatprep.subr.mxu0 0.0
  %160 = vmatpush1.msra.mxu0 0.0
  %161 = vmatprep.subr.mxu0 0.0
  %162 = vmatpush1.msra.mxu0 0.0
  %163 = vmatprep.subr.mxu0 0.0
  %164 = vmatpush1.msra.mxu0 0.0
  %165 = vmatprep.subr.mxu0 0.0
  %166 = vmatpush1.msra.mxu0 0.0
  %167 = vmatprep.subr.mxu0 0.0
  %168 = vmatpush1.msra.mxu0 0.0
  %169 = vmatprep.subr.mxu0 0.0
  %170 = vmatpush1.msra.mxu0 0.0
  %171 = vmatprep.subr.mxu0 0.0
  %172 = vmatpush1.msra.mxu0 0.0
  %173 = vmatprep.subr.mxu0 0.0
  %174 = vmatpush1.msra.mxu0 0.0
  %175 = vmatprep.subr.mxu0 0.0
  %176 = vmatpush1.msra.mxu0 0.0
  %177 = vmatprep.subr.mxu0 0.0
  %178 = vmatpush1.msra.mxu0 0.0
  %179 = vmatprep.subr.mxu0 0.0
  %180 = vmatpush1.msra.mxu0 0.0
  %181 = vmatprep.subr.mxu0 0.0
  %182 = vmatpush1.msra.mxu0 0.0
  %183 = vmatprep.subr.mxu0 0.0
  %184 = vmatpush1.msra.mxu0 0.0
  %185 = vmatprep.subr.mxu0 0.0
  %186 = vmatpush1.msra.mxu0 0.0
  %187 = vmatprep.subr.mxu0 0.0
  %188 = vmatpush1.msra.mxu0 0.0
  %189 = vmatprep.subr.mxu0 0.0
  %190 = vmatpush1.msra.mxu0 0.0
  %191 = vmatprep.subr.mxu0 0.0
  %192 = vmatpush1.msra.mxu0 0.0
  %193 = vmatprep.subr.mxu0 0.0
  %194 = vmatpush1.msra.mxu0 0.0
  %195 = vmatprep.subr.mxu0 0.0
  %196 = vmatpush1.msra.mxu0 0.0
  %197 = vmatprep.subr.mxu0 0.0
  %198 = vmatpush1.msra.mxu0 0.0
  %199 = vmatprep.subr.mxu0 0.0
  %200 = vmatpush1.msra.mxu0 0.0
  %201 = vmatprep.subr.mxu0 0.0
  %202 = vmatpush1.msra.mxu0 0.0
  %203 = vmatprep.subr.mxu0 0.0
  %204 = vmatpush1.msra.mxu0 0.0
  %205 = vmatprep.subr.mxu0 0.0
  %206 = vmatpush1.msra.mxu0 0.0
  %207 = vmatprep.subr.mxu0 0.0
  %208 = vmatpush1.msra.mxu0 0.0
  %209 = vmatprep.mubr.f32.mxu0 0.0
  %210 = vmatmul.mubr.f32.gmra.mrb[0].mxu0 %v65
  %v211 = vpop.f32.mrb[0].mxu0
  %v212 = vadd.f32 0.0, %v211
  %v213 = vpop.f32.mrb[0].mxu0
  %214 = vmatprep.mubr.f32.mxu0 0.0
  %215 = vmatmul.mubr.f32.gmra.mrb[0].mxu0 %v68
  %v216 = vpop.f32.mrb[0].mxu0
  %v217 = vadd.f32 0.0, %v216
  %v218 = vpop.f32.mrb[0].mxu0
  %219 = vdwg.mxu0
  %v220 = vmax.f32 %v212, 1.0
  %v221 = vmax.f32 %v217, 1.0
  %v222 = vrcp.pop %v220
  %v223 = vmul.f32 1.0, %v222
  %v224 = vrcp.pop %v221
  %v225 = vmul.f32 1.0, %v224
  %227 = vset.pattern.permute.xlu0 0
  %228 = vperm.xlu0 %227, %v223
  %v229 = vpop.permute.xlu0 %228
  %232 = vset.pattern.permute.xlu0 0
  %233 = vperm.xlu0 %232, %v225
  %v234 = vpop.permute.xlu0 %233
  %v236 = vmul.f32 %v137, %v229
  %v237 = vmul.f32 %v142, %v234
  %v238 = vmul.f32 %v18, 0.99
  %v239 = vmul.f32 %v19, 0.99
  %v240 = vmul.f32 %v236, 0.01
  %v241 = vmul.f32 %v237, 0.01
  %v242 = vadd.f32 %v238, %v240
  %v243 = vadd.f32 %v239, %v241
  %vm244 = vcmp.gt.f32.partialorder %v212, 0.0
  %vm245 = vcmp.gt.f32.partialorder %v217, 0.0
  %v246 = vsel %vm244, 1, 0
  %v247 = vsel %vm245, 1, 0
  %248 = vset.pattern.permute.xlu0 0
  %249 = vperm.xlu0 %248, %v246
  %v250 = vpop.permute.xlu0 %249
  %251 = vset.pattern.permute.xlu0 0
  %252 = vperm.xlu0 %251, %v247
  %v253 = vpop.permute.xlu0 %252
  %vm254 = vcmp.eq.s32.totalorder %v250, 1
  %vm255 = vcmp.eq.s32.totalorder %v253, 1
  %v256 = vsel %vm254, %v242, %v18
  %v257 = vsel %vm255, %v243, %v19
  %258 = vst [vmem:[%s4] sm:$0xff] %v256
  %259 = vst [vmem:[%s4 + $0x8] sm:$0x3] %v257
  %261 = vset.pattern.permute.xlu0 0
  %262 = vperm.xlu0 %261, %v212
  %v263 = vpop.permute.xlu0 %262
  %266 = vset.pattern.permute.xlu0 0
  %267 = vperm.xlu0 %266, %v217
  %v268 = vpop.permute.xlu0 %267
  %v270 = vmul.f32 %v263, %v256
  %v271 = vmul.f32 %v268, %v257
  %v272 = vmul.f32 %v137, 2.0
  %v273 = vmul.f32 %v142, 2.0
  %v274 = vsub.f32 %v270, %v272
  %v275 = vsub.f32 %v271, %v273
  %v276 = vmul.f32 %v256, %v274
  %v277 = vmul.f32 %v257, %v275
  %278 = vadd.xlane.f32.xlu0 %v276
  %v279 = vpop.xlane.xlu0 %278
  %vm280 = vcmask 1041408
  %v281 = vsel %vm280, %v277, 0.0
  %282 = vadd.xlane.f32.xlu0 %v281
  %v283 = vpop.xlane.xlu0 %282
  %vm284 = vcmask 7168
  %285 = vst.msk [vmem:[%s3] sm:$0xff] %vm284, %v279
  %vm286 = vcmask 1024
  %287 = vst.msk [vmem:[%s3 + $0x8] sm:$0x3] %vm286, %v283
  // Predicated region
  $region14: #{tpu_custom_call.1} parent=0 // pred_check
    _
  $region15: #{tpu_custom_call.1} parent=0 // pred_check_branch
    %289 = sbr.rel (0) target = $region17
  $region16: #{tpu_custom_call.1} parent=0 // pred_region
    _
  $region17: #{tpu_custom_call.1} parent=0 // pred_fallthru
    _
  // Predicated region
  $region18: #{tpu_custom_call.1} parent=0 // pred_check
    _
  $region19: #{tpu_custom_call.1} parent=0 // pred_check_branch
    %291 = sbr.rel (0) target = $region21
  $region20: #{tpu_custom_call.1} parent=0 // pred_region
    _
  $region21: #{tpu_custom_call.1} parent=0 // pred_fallthru
    _
  // Predicated region
  $region22: #{tpu_custom_call.1} parent=0 // pred_check
    _
  $region23: #{tpu_custom_call.1} parent=0 // pred_check_branch
    %293 = sbr.rel (0) target = $region25
  $region24: #{tpu_custom_call.1} parent=0 // pred_region
    _
  $region25: #{tpu_custom_call.1} parent=0 // pred_fallthru
    _
  // Predicated region
  $region26: #{tpu_custom_call.1} parent=0 // pred_check
    _
  $region27: #{tpu_custom_call.1} parent=0 // pred_check_branch
    %295 = sbr.rel (0) target = $region29
  $region28: #{tpu_custom_call.1} parent=0 // pred_region
    _
  $region29: #{tpu_custom_call.1} parent=0 // pred_fallthru
    _

</llo_original>
